<compile_context>
chip_gen: v5e
topology: v5e:2x2
jax: 0.10.0
libtpu: 0.0.40
codegen_flags: <defaults>
</compile_context>

<pallas_src>
import jax
import jax.numpy as jnp
from jax.experimental import pallas as pl
from jax.experimental.pallas import tpu as pltpu


def _qnet_kernel(x_ref, w1_ref, b1_ref, w2_ref, b2_ref, w3_ref, b3_ref, o_ref):
    # Feature-major: x_ref is [(S+A), tb] with the batch on the lane axis.
    # Layer 1: (H1, S+A) @ (S+A, tb) -> (H1, tb); f32 accumulation on the MXU.
    h1 = jnp.dot(w1_ref[...], x_ref[...], preferred_element_type=jnp.float32)
    h1 = jnp.maximum(h1 + b1_ref[...], 0.0)                     # bias + ReLU in f32

    # Layer 2: (H2, H1) @ (H1, tb) -> (H2, tb).
    h2 = jnp.dot(w2_ref[...], h1.astype(w2_ref.dtype),
                 preferred_element_type=jnp.float32)
    h2 = jnp.maximum(h2 + b2_ref[...], 0.0)

    # Layer 3 (output width 1): single MXU matmul (1, H2) @ (H2, tb) -> (1, tb).
    # The MXU is idle here and the result is already lane-dense; no XLU
    # lane-reduce and no (tb,) -> (1, tb) relayout.
    q = jnp.dot(w3_ref[...], h2.astype(w3_ref.dtype),
                preferred_element_type=jnp.float32)
    o_ref[...] = (q + b3_ref[0, 0]).astype(o_ref.dtype)


def _pick_batch_tile(B, block_b):
    """Batch (lane-axis) tile: a multiple of 128, large enough to amortize the
    ~0.35us per-grid-step overhead, but capped so that big batches always get
    >= 2 grid steps (v7x can then shard the batch across both TensorCores)."""
    lane = 128
    tb = max(lane, (min(block_b, 8192) // lane) * lane)
    b_pad_min = pl.cdiv(B, lane) * lane
    tb = min(tb, b_pad_min)                       # never bigger than padded batch
    if B >= 2 * lane:
        tb = min(tb, max(lane, (B // 2 // lane) * lane))   # guarantee grid >= 2
    return tb


def qnetwork_forward(state, action, params, *, block_b=4096,
                     compute_dtype=jnp.float32):
    """state: [B, state_dim], action: [B, action_dim] -> q: [B] (float32).

    compute_dtype controls the MXU operand dtype (f32 or bf16); bias-add/ReLU
    and accumulation are always f32."""
    w1, b1, w2, b2, w3, b3 = params          # w*: [out, in], b1/b2: [out, 1]
    B, S = state.shape
    A = action.shape[1]
    F = S + A
    H1 = w1.shape[0]
    H2 = w2.shape[0]

    tb = _pick_batch_tile(B, block_b)
    B_pad = pl.cdiv(B, tb) * tb
    grid = (B_pad // tb,)

    # Wrapper-side layout plumbing (cheap): cat + transpose once so the batch
    # sits on the lane axis, then zero-pad B up to a tile multiple so every
    # block is lane-dense (no masked partial stores, bounded VMEM per step).
    x = jnp.concatenate([state, action], axis=-1).astype(compute_dtype)  # (B, F)
    xT = x.T                                                             # (F, B)
    if B_pad != B:
        xT = jnp.pad(xT, ((0, 0), (0, B_pad - B)))

    cast_w = lambda w: w.astype(compute_dtype)
    resident = lambda i: (0, 0)   # weights/biases pinned across the batch grid

    out = pl.pallas_call(
        _qnet_kernel,
        out_shape=jax.ShapeDtypeStruct((1, B_pad), jnp.float32),
        grid=grid,
        in_specs=[
            pl.BlockSpec((F, tb), lambda i: (0, i)),            # x_T batch tile
            pl.BlockSpec((H1, F), resident),                    # W1 [out, in]
            pl.BlockSpec((H1, 1), resident),                    # b1 column (f32)
            pl.BlockSpec((H2, H1), resident),                   # W2 [out, in]
            pl.BlockSpec((H2, 1), resident),                    # b2 column (f32)
            pl.BlockSpec((1, H2), resident),                    # W3 row
            pl.BlockSpec(memory_space=pltpu.MemorySpace.SMEM),  # b3 scalar
        ],
        out_specs=pl.BlockSpec((1, tb), lambda i: (0, i)),      # lane-dense q row
        compiler_params=pltpu.CompilerParams(
            dimension_semantics=("parallel",)),                 # megacore-shardable
    )(xT, cast_w(w1), b1, cast_w(w2), b2, cast_w(w3), b3)

    # (1, B_pad) -> (B,)   (matches torch.squeeze(q, -1))
    return out[0, :B]


def init_params(key, state_dim, action_dim, hidden_1_dim, hidden_2_dim):
    """Deterministic synthetic init (PyTorch Linear-like uniform fan-in bounds).

    Stored kernel-ready: weights in torch's natural [out, in] layout (which is
    exactly what the feature-major kernel wants), biases as [out, 1] columns,
    b3 as a (1, 1) scalar."""
    ks = jax.random.split(key, 6)

    def lin(kw, kb, fan_in, fan_out):
        bound = float(fan_in) ** -0.5
        w = jax.random.uniform(kw, (fan_out, fan_in), jnp.float32, -bound, bound)
        b = jax.random.uniform(kb, (fan_out, 1), jnp.float32, -bound, bound)
        return w, b

    w1, b1 = lin(ks[0], ks[1], state_dim + action_dim, hidden_1_dim)
    w2, b2 = lin(ks[2], ks[3], hidden_1_dim, hidden_2_dim)
    w3, b3 = lin(ks[4], ks[5], hidden_2_dim, 1)
    return (w1, b1, w2, b2, w3, b3)


def _reference(state, action, params):
    w1, b1, w2, b2, w3, b3 = params
    x = jnp.concatenate([state, action], axis=-1)
    h1 = jnp.maximum(x @ w1.T + b1[:, 0], 0.0)
    h2 = jnp.maximum(h1 @ w2.T + b2[:, 0], 0.0)
    return h2 @ w3[0] + b3[0, 0]


if __name__ == "__main__":
    key = jax.random.PRNGKey(0)
    k_s1, k_a1, k_p, k_s2, k_a2, k_s3, k_a3 = jax.random.split(key, 7)

    state_dim, action_dim = 12, 4
    hidden_1_dim, hidden_2_dim = 32, 32
    params = init_params(k_p, state_dim, action_dim, hidden_1_dim, hidden_2_dim)

    # 1) Tiny batch: padded to one 128-wide block (grid of 1).
    b1_sz = 8
    s1 = jax.random.normal(k_s1, (b1_sz, state_dim), jnp.float32)
    a1 = jax.random.normal(k_a1, (b1_sz, action_dim), jnp.float32)
    q1 = jax.block_until_ready(qnetwork_forward(s1, a1, params))
    assert q1.shape == (b1_sz,)
    assert jnp.allclose(q1, _reference(s1, a1, params), atol=1e-5, rtol=1e-5)

    # 2) Multi-tile batch: 384 rows -> tb=128, grid of 3 (pipelined, megacore-
    #    shardable batch axis, resident weights).
    b2_sz = 384
    s2 = jax.random.normal(k_s2, (b2_sz, state_dim), jnp.float32)
    a2 = jax.random.normal(k_a2, (b2_sz, action_dim), jnp.float32)
    q2 = jax.block_until_ready(qnetwork_forward(s2, a2, params))
    assert q2.shape == (b2_sz,)
    assert jnp.allclose(q2, _reference(s2, a2, params), atol=1e-5, rtol=1e-5)

    # 3) Irregular batch + bf16 MXU operands: exercises the zero-pad/slice path
    #    and the reduced-precision input pipeline (f32 accumulation).
    b3_sz = 1000
    s3 = jax.random.normal(k_s3, (b3_sz, state_dim), jnp.float32)
    a3 = jax.random.normal(k_a3, (b3_sz, action_dim), jnp.float32)
    q3 = jax.block_until_ready(
        qnetwork_forward(s3, a3, params, compute_dtype=jnp.bfloat16))
    assert q3.shape == (b3_sz,)
    assert jnp.allclose(q3, _reference(s3, a3, params), atol=5e-2, rtol=5e-2)

    print("KERNEL_OK")
</pallas_src>

<mosaic_0001>
module attributes {stable_mosaic.version = 11 : i64} {
  func.func @_qnet_kernel(%arg0: i32, %arg1: memref<16x128xf32, #tpu.memory_space<vmem>>, %arg2: memref<32x16xf32, #tpu.memory_space<vmem>>, %arg3: memref<32x1xf32, #tpu.memory_space<vmem>>, %arg4: memref<32x32xf32, #tpu.memory_space<vmem>>, %arg5: memref<32x1xf32, #tpu.memory_space<vmem>>, %arg6: memref<1x32xf32, #tpu.memory_space<vmem>>, %arg7: memref<1x1xf32, #tpu.memory_space<smem>>, %arg8: memref<1x128xf32, #tpu.memory_space<vmem>>) attributes {dimension_semantics = [#tpu.dimension_semantics<parallel>], iteration_bounds = array<i64: 1>, scalar_prefetch = 0 : i64, scratch_operands = 0 : i64, tpu.core_type = #tpu.core_type<tc>, window_params = [{transform_indices = @transform_0, window_bounds = array<i64: 16, 128>}, {pipeline_mode = #tpu.pipeline_mode<synchronous>, transform_indices = @transform_1, window_bounds = array<i64: 32, 16>}, {pipeline_mode = #tpu.pipeline_mode<synchronous>, transform_indices = @transform_2, window_bounds = array<i64: 32, 1>}, {pipeline_mode = #tpu.pipeline_mode<synchronous>, transform_indices = @transform_3, window_bounds = array<i64: 32, 32>}, {pipeline_mode = #tpu.pipeline_mode<synchronous>, transform_indices = @transform_4, window_bounds = array<i64: 32, 1>}, {pipeline_mode = #tpu.pipeline_mode<synchronous>, transform_indices = @transform_5, window_bounds = array<i64: 1, 32>}, {transform_indices = @transform_6, window_bounds = array<i64: 1, 1>}, {transform_indices = @transform_7, window_bounds = array<i64: 1, 128>}]} {
    %c0 = arith.constant 0 : index
    %c0_0 = arith.constant 0 : index
    %0 = vector.load %arg2[%c0, %c0_0] : memref<32x16xf32, #tpu.memory_space<vmem>>, vector<32x16xf32>
    %c0_1 = arith.constant 0 : index
    %c0_2 = arith.constant 0 : index
    %1 = vector.load %arg1[%c0_1, %c0_2] : memref<16x128xf32, #tpu.memory_space<vmem>>, vector<16x128xf32>
    %cst = arith.constant dense<0.000000e+00> : vector<32x128xf32>
    %2 = tpu.matmul %0, %1, %cst {dimension_numbers = #tpu.dot_dimension_numbers<[1], [0], [0], [1], [0, 0, 1, 1], [], []>} : vector<32x16xf32>, vector<16x128xf32>, vector<32x128xf32> -> vector<32x128xf32>
    %c0_3 = arith.constant 0 : index
    %c0_4 = arith.constant 0 : index
    %3 = vector.load %arg3[%c0_3, %c0_4] : memref<32x1xf32, #tpu.memory_space<vmem>>, vector<32x1xf32>
    %4 = vector.broadcast %3 : vector<32x1xf32> to vector<32x128xf32>
    %5 = arith.addf %2, %4 : vector<32x128xf32>
    %cst_5 = arith.constant 0.000000e+00 : f32
    %6 = vector.broadcast %cst_5 : f32 to vector<32x128xf32>
    %7 = arith.maximumf %5, %6 : vector<32x128xf32>
    %c0_6 = arith.constant 0 : index
    %c0_7 = arith.constant 0 : index
    %8 = vector.load %arg4[%c0_6, %c0_7] : memref<32x32xf32, #tpu.memory_space<vmem>>, vector<32x32xf32>
    %cst_8 = arith.constant dense<0.000000e+00> : vector<32x128xf32>
    %9 = tpu.matmul %8, %7, %cst_8 {dimension_numbers = #tpu.dot_dimension_numbers<[1], [0], [0], [1], [0, 0, 1, 1], [], []>} : vector<32x32xf32>, vector<32x128xf32>, vector<32x128xf32> -> vector<32x128xf32>
    %c0_9 = arith.constant 0 : index
    %c0_10 = arith.constant 0 : index
    %10 = vector.load %arg5[%c0_9, %c0_10] : memref<32x1xf32, #tpu.memory_space<vmem>>, vector<32x1xf32>
    %11 = vector.broadcast %10 : vector<32x1xf32> to vector<32x128xf32>
    %12 = arith.addf %9, %11 : vector<32x128xf32>
    %cst_11 = arith.constant 0.000000e+00 : f32
    %13 = vector.broadcast %cst_11 : f32 to vector<32x128xf32>
    %14 = arith.maximumf %12, %13 : vector<32x128xf32>
    %c0_12 = arith.constant 0 : index
    %c0_13 = arith.constant 0 : index
    %15 = vector.load %arg6[%c0_12, %c0_13] : memref<1x32xf32, #tpu.memory_space<vmem>>, vector<1x32xf32>
    %cst_14 = arith.constant dense<0.000000e+00> : vector<1x128xf32>
    %16 = tpu.matmul %15, %14, %cst_14 {dimension_numbers = #tpu.dot_dimension_numbers<[1], [0], [0], [1], [0, 0, 1, 1], [], []>} : vector<1x32xf32>, vector<32x128xf32>, vector<1x128xf32> -> vector<1x128xf32>
    %c0_15 = arith.constant 0 : index
    %c0_16 = arith.constant 0 : index
    %17 = memref.load %arg7[%c0_15, %c0_16] : memref<1x1xf32, #tpu.memory_space<smem>>
    %18 = vector.broadcast %17 : f32 to vector<1x128xf32>
    %19 = arith.addf %16, %18 : vector<1x128xf32>
    %c0_17 = arith.constant 0 : index
    %c0_18 = arith.constant 0 : index
    %20 = vector.load %arg8[%c0_17, %c0_18] : memref<1x128xf32, #tpu.memory_space<vmem>>, vector<1x128xf32>
    tpu.vector_store %arg8[%c0_17, %c0_18], %19 {strides = array<i32>} : memref<1x128xf32, #tpu.memory_space<vmem>>, vector<1x128xf32>,
    return
  }
  func.func @transform_0(%arg0: i32) -> (i32, i32) {
    %c0_i32 = arith.constant 0 : i32
    %c0_i32_0 = arith.constant 0 : i32
    return %c0_i32, %arg0 : i32, i32
  }
  func.func @transform_1(%arg0: i32) -> (i32, i32) {
    %c0_i32 = arith.constant 0 : i32
    %c0_i32_0 = arith.constant 0 : i32
    %c0_i32_1 = arith.constant 0 : i32
    return %c0_i32, %c0_i32_0 : i32, i32
  }
  func.func @transform_2(%arg0: i32) -> (i32, i32) {
    %c0_i32 = arith.constant 0 : i32
    %c0_i32_0 = arith.constant 0 : i32
    %c0_i32_1 = arith.constant 0 : i32
    return %c0_i32, %c0_i32_0 : i32, i32
  }
  func.func @transform_3(%arg0: i32) -> (i32, i32) {
    %c0_i32 = arith.constant 0 : i32
    %c0_i32_0 = arith.constant 0 : i32
    %c0_i32_1 = arith.constant 0 : i32
    return %c0_i32, %c0_i32_0 : i32, i32
  }
  func.func @transform_4(%arg0: i32) -> (i32, i32) {
    %c0_i32 = arith.constant 0 : i32
    %c0_i32_0 = arith.constant 0 : i32
    %c0_i32_1 = arith.constant 0 : i32
    return %c0_i32, %c0_i32_0 : i32, i32
  }
  func.func @transform_5(%arg0: i32) -> (i32, i32) {
    %c0_i32 = arith.constant 0 : i32
    %c0_i32_0 = arith.constant 0 : i32
    %c0_i32_1 = arith.constant 0 : i32
    return %c0_i32, %c0_i32_0 : i32, i32
  }
  func.func @transform_6(%arg0: i32) -> (i32, i32) {
    %c0_i32 = arith.constant 0 : i32
    %c0_i32_0 = arith.constant 0 : i32
    %c0_i32_1 = arith.constant 0 : i32
    return %c0_i32, %c0_i32_0 : i32, i32
  }
  func.func @transform_7(%arg0: i32) -> (i32, i32) {
    %c0_i32 = arith.constant 0 : i32
    %c0_i32_0 = arith.constant 0 : i32
    return %c0_i32, %arg0 : i32, i32
  }
}

</mosaic_0001>

<llo_original>
// kernel: tpu_custom_call.1
$region0: #{tpu_custom_call.1}
  #allocation0 [shape = 'u32[]', space=smem, size = 0x4, offset = 0x4, fixed_abs, tag = 'smem constant byte address 0x4 - core index']
  #allocation1 [shape = 'u32[72,128]{1,0:T(1,128)}', space=vmem, size = 0x9000, scoped, tag = 'internal scratch']
  #allocation2 [shape = 'f32[1,1]{1,0:T(1,128)S(6)}', space=smem, size = 0x200, scoped, tag = 'scoped memory for tpu_custom_call.1']
  %s0 = inlined_call_operand.vmem [shape: f32[16,128], index: 0, kind: input, shape index: {}]
  %s1 = inlined_call_operand.vmem [shape: f32[32,16], index: 1, kind: input, shape index: {}]
  %s2 = inlined_call_operand.vmem [shape: f32[32,1], index: 2, kind: input, shape index: {}]
  %s3 = inlined_call_operand.vmem [shape: f32[32,32], index: 3, kind: input, shape index: {}]
  %s4 = inlined_call_operand.vmem [shape: f32[32,1], index: 4, kind: input, shape index: {}]
  %s5 = inlined_call_operand.vmem [shape: f32[1,32], index: 5, kind: input, shape index: {}]
  %s6 = inlined_call_operand.<no memory space> [shape: f32[1,1], index: 6, kind: input, shape index: {}]
  %s7 = inlined_call_operand.hbm [shape: f32[1,128], index: 7, kind: output, shape index: {}]
  %s8 = sld [smem:[#allocation0]]
  $region38: #{tpu_custom_call.1} parent=0
    _
  %s10 = ssub.s32 1, %s8
  %s11 = scalar_select 0, %s10, %s8
  %12 = sst [smem:[#allocation2]] %s6
  $region1: #{tpu_custom_call.1} parent=0
    #allocation3 [shape = 'u8[512]{0}', space=vmem, size = 0x400, scoped, tag = 'output window, operand 0, single buffered']
    #allocation4 [shape = 's32[1]{0}', space=sflag, size = 0x4, scoped, tag = 'scoped memory for tpu_custom_call.1']
    %13 = vsyncpa [#allocation4], 0
    // Predicated region
    $region2: #{tpu_custom_call.1} parent=1 // pred_check
      _
    $region3: #{tpu_custom_call.1} parent=1 // pred_check_branch
      %15 = sbr.rel (0) target = $region5
    $region4: #{tpu_custom_call.1} parent=1 // pred_region
      _
    $region5: #{tpu_custom_call.1} parent=1 // pred_fallthru
      _
    // Predicated region
    $region6: #{tpu_custom_call.1} parent=1 // pred_check
      _
    $region7: #{tpu_custom_call.1} parent=1 // pred_check_branch
      %17 = sbr.rel (0) target = $region9
    $region8: #{tpu_custom_call.1} parent=1 // pred_region
      _
    $region9: #{tpu_custom_call.1} parent=1 // pred_fallthru
      _
    // Predicated region
    $region10: #{tpu_custom_call.1} parent=1 // pred_check
      _
    $region11: #{tpu_custom_call.1} parent=1 // pred_check_branch
      %19 = sbr.rel (0) target = $region13
    $region12: #{tpu_custom_call.1} parent=1 // pred_region
      _
    $region13: #{tpu_custom_call.1} parent=1 // pred_fallthru
      _
    // Predicated region
    $region14: #{tpu_custom_call.1} parent=1 // pred_check
      _
    $region15: #{tpu_custom_call.1} parent=1 // pred_check_branch
      %21 = sbr.rel (0) target = $region17
    $region16: #{tpu_custom_call.1} parent=1 // pred_region
      _
    $region17: #{tpu_custom_call.1} parent=1 // pred_fallthru
      _
    // Predicated region
    $region18: #{tpu_custom_call.1} parent=1 // pred_check
      _
    $region19: #{tpu_custom_call.1} parent=1 // pred_check_branch
      %23 = sbr.rel (0) target = $region21
    $region20: #{tpu_custom_call.1} parent=1 // pred_region
      _
    $region21: #{tpu_custom_call.1} parent=1 // pred_fallthru
      _
    // Predicated region
    $region22: #{tpu_custom_call.1} parent=1 // pred_check
      _
    $region23: #{tpu_custom_call.1} parent=1 // pred_check_branch
      %25 = sbr.rel (0) target = $region25
    $region24: #{tpu_custom_call.1} parent=1 // pred_region
      _
    $region25: #{tpu_custom_call.1} parent=1 // pred_fallthru
      _
    // Predicated region
    $region26: #{tpu_custom_call.1} parent=1 // pred_check
      _
    $region27: #{tpu_custom_call.1} parent=1 // pred_check_branch
      %27 = sbr.rel (0) target = $region29
    $region28: #{tpu_custom_call.1} parent=1 // pred_region
      _
    $region29: #{tpu_custom_call.1} parent=1 // pred_fallthru
      _
    %v28 = vld [vmem:[%s1] sm:$0xff]
    %v29 = vld [vmem:[%s1 + $0x8] sm:$0xff]
    %v30 = vld [vmem:[%s1 + $0x10] sm:$0xff]
    %v31 = vld [vmem:[%s1 + $0x18] sm:$0xff]
    %v32 = vld [vmem:[%s0] sm:$0xff]
    %v33 = vld [vmem:[%s0 + $0x8] sm:$0xff]
    %v34 = vld [vmem:[%s2] sm:$0xff]
    %v35 = vld [vmem:[%s2 + $0x8] sm:$0xff]
    %v36 = vld [vmem:[%s2 + $0x10] sm:$0xff]
    %v37 = vld [vmem:[%s2 + $0x18] sm:$0xff]
    %39 = vset.pattern.permute.xlu0 0
    %40 = vperm.xlu0 %39, %v34
    %v41 = vpop.permute.xlu0 %40
    %44 = vset.pattern.permute.xlu0 0
    %45 = vperm.xlu0 %44, %v35
    %v46 = vpop.permute.xlu0 %45
    %49 = vset.pattern.permute.xlu0 0
    %50 = vperm.xlu0 %49, %v36
    %v51 = vpop.permute.xlu0 %50
    %54 = vset.pattern.permute.xlu0 0
    %55 = vperm.xlu0 %54, %v37
    %v56 = vpop.permute.xlu0 %55
    %vm58 = vcmask 130048
    %v60 = vsel %vm58, %v28, 0
    %v63 = vsel %vm58, %v29, 0
    %v66 = vsel %vm58, %v30, 0
    %v69 = vsel %vm58, %v31, 0
    %71 = vmatpush.msra.mxu0 0.0
    %72 = vmatpush.msra.mxu0 0.0
    %73 = vmatpush.msra.mxu0 0.0
    %74 = vmatpush.msra.mxu0 0.0
    %75 = vmatpush.msra.mxu0 0.0
    %76 = vmatpush.msra.mxu0 0.0
    %77 = vmatpush.msra.mxu0 0.0
    %78 = vmatpush.msra.mxu0 0.0
    %79 = vmatpush.msra.mxu0 0.0
    %80 = vmatpush.msra.mxu0 0.0
    %81 = vmatpush.msra.mxu0 0.0
    %82 = vmatpush.msra.mxu0 0.0
    %83 = vmatpush.msra.mxu0 0.0
    %84 = vmatpush.msra.mxu0 0.0
    %85 = vmatpush.msra.mxu0 %v33
    %86 = vmatpush.msra.mxu0 %v32
    %87 = vmatmul.f32.gmra.mxu0 %v60
    %v88 = vpop.f32.mrf.mxu0
    %v89 = vadd.f32 %v41, %v88
    %90 = vmatmul.f32.gmra.mxu0 %v63
    %v91 = vpop.f32.mrf.mxu0
    %v92 = vadd.f32 %v46, %v91
    %93 = vmatmul.f32.gmra.mxu0 %v66
    %v94 = vpop.f32.mrf.mxu0
    %v95 = vadd.f32 %v51, %v94
    %96 = vmatmul.f32.gmra.mxu0 %v69
    %v97 = vpop.f32.mrf.mxu0
    %v98 = vadd.f32 %v56, %v97
    %99 = vdwg.mxu0
    %v100 = vmax.f32 %v89, 0.0
    %v101 = vmax.f32 %v92, 0.0
    %v102 = vmax.f32 %v95, 0.0
    %v103 = vmax.f32 %v98, 0.0
    %v104 = vld [vmem:[%s3] sm:$0xff]
    %v105 = vld [vmem:[%s3 + $0x8] sm:$0xff]
    %v106 = vld [vmem:[%s3 + $0x10] sm:$0xff]
    %v107 = vld [vmem:[%s3 + $0x18] sm:$0xff]
    %v108 = vld [vmem:[%s4] sm:$0xff]
    %v109 = vld [vmem:[%s4 + $0x8] sm:$0xff]
    %v110 = vld [vmem:[%s4 + $0x10] sm:$0xff]
    %v111 = vld [vmem:[%s4 + $0x18] sm:$0xff]
    %113 = vset.pattern.permute.xlu0 0
    %114 = vperm.xlu0 %113, %v108
    %v115 = vpop.permute.xlu0 %114
    %118 = vset.pattern.permute.xlu0 0
    %119 = vperm.xlu0 %118, %v109
    %v120 = vpop.permute.xlu0 %119
    %123 = vset.pattern.permute.xlu0 0
    %124 = vperm.xlu0 %123, %v110
    %v125 = vpop.permute.xlu0 %124
    %128 = vset.pattern.permute.xlu0 0
    %129 = vperm.xlu0 %128, %v111
    %v130 = vpop.permute.xlu0 %129
    %vm132 = vcmask 261120
    %v134 = vsel %vm132, %v104, 0
    %v137 = vsel %vm132, %v105, 0
    %v140 = vsel %vm132, %v106, 0
    %v143 = vsel %vm132, %v107, 0
    %145 = vmatpush.msra.mxu0 0.0
    %146 = vmatpush.msra.mxu0 0.0
    %147 = vmatpush.msra.mxu0 0.0
    %148 = vmatpush.msra.mxu0 0.0
    %149 = vmatpush.msra.mxu0 0.0
    %150 = vmatpush.msra.mxu0 0.0
    %151 = vmatpush.msra.mxu0 0.0
    %152 = vmatpush.msra.mxu0 0.0
    %153 = vmatpush.msra.mxu0 0.0
    %154 = vmatpush.msra.mxu0 0.0
    %155 = vmatpush.msra.mxu0 0.0
    %156 = vmatpush.msra.mxu0 0.0
    %157 = vmatpush.msra.mxu0 %v103
    %158 = vmatpush.msra.mxu0 %v102
    %159 = vmatpush.msra.mxu0 %v101
    %160 = vmatpush.msra.mxu0 %v100
    %161 = vmatmul.f32.gmra.mxu0 %v134
    %v162 = vpop.f32.mrf.mxu0
    %v163 = vadd.f32 %v115, %v162
    %164 = vmatmul.f32.gmra.mxu0 %v137
    %v165 = vpop.f32.mrf.mxu0
    %v166 = vadd.f32 %v120, %v165
    %167 = vmatmul.f32.gmra.mxu0 %v140
    %v168 = vpop.f32.mrf.mxu0
    %v169 = vadd.f32 %v125, %v168
    %170 = vmatmul.f32.gmra.mxu0 %v143
    %v171 = vpop.f32.mrf.mxu0
    %v172 = vadd.f32 %v130, %v171
    %173 = vdwg.mxu0
    %v174 = vmax.f32 %v163, 0.0
    %v175 = vmax.f32 %v166, 0.0
    %v176 = vmax.f32 %v169, 0.0
    %v177 = vmax.f32 %v172, 0.0
    %v178 = vld [vmem:[%s5] sm:$0x1]
    %s179 = sld [smem:[#allocation2]]
    %v180 = vstv %s179
    %v182 = vsel %vm132, %v178, 0
    %184 = vmatpush.msra.mxu0 0.0
    %185 = vmatpush.msra.mxu0 0.0
    %186 = vmatpush.msra.mxu0 0.0
    %187 = vmatpush.msra.mxu0 0.0
    %188 = vmatpush.msra.mxu0 0.0
    %189 = vmatpush.msra.mxu0 0.0
    %190 = vmatpush.msra.mxu0 0.0
    %191 = vmatpush.msra.mxu0 0.0
    %192 = vmatpush.msra.mxu0 0.0
    %193 = vmatpush.msra.mxu0 0.0
    %194 = vmatpush.msra.mxu0 0.0
    %195 = vmatpush.msra.mxu0 0.0
    %196 = vmatpush.msra.mxu0 %v177
    %197 = vmatpush.msra.mxu0 %v176
    %198 = vmatpush.msra.mxu0 %v175
    %199 = vmatpush.msra.mxu0 %v174
    %200 = vmatmul.f32.gmra.mxu0 %v182
    %v201 = vpop.f32.mrf.mxu0
    %v202 = vadd.f32 %v180, %v201
    %203 = vdwg.mxu0
    %204 = vst [vmem:[#allocation3] sm:$0x1] %v202
    // Predicated region
    $region30: #{tpu_custom_call.1} parent=1 // pred_check
      _
    $region31: #{tpu_custom_call.1} parent=1 // pred_check_branch
      %206 = sbr.rel (0) target = $region33
    $region32: #{tpu_custom_call.1} parent=1 // pred_region
      %208 = vsyncadd [#allocation4], 0
      %s210 = sshll.u32 [#allocation3], 4
      %s211 = int_to_ptr.vmem [resolvable:$true] %s210
      %s212 = sshll.u32 %s7, 4
      %s213 = int_to_ptr.hbm [resolvable:$true] %s212
      %215 = dma.vmem_to_hbm [thread:$0]  %s211, 16, %s213, [#allocation4]
    $region33: #{tpu_custom_call.1} parent=1 // pred_fallthru
      _
    // Predicated region
    $region34: #{tpu_custom_call.1} parent=1 // pred_check
      _
    $region35: #{tpu_custom_call.1} parent=1 // pred_check_branch
      %217 = sbr.rel (0) target = $region37
    $region36: #{tpu_custom_call.1} parent=1 // pred_region
      %219 = dma.done [#allocation4], 16
    $region37: #{tpu_custom_call.1} parent=1 // pred_fallthru
      _
    %220 = vsyncpa [#allocation4], 1

</llo_original>
